<compile_context>
chip_gen: v6e
topology: v6e:2x2x1
jax: 0.10.0
libtpu: 0.0.40
codegen_flags: <defaults>
</compile_context>

<pallas_src>
import functools

import jax
import jax.numpy as jnp
from jax.experimental import pallas as pl
from jax.experimental.pallas import tpu as pltpu


def _round_up(a: int, b: int) -> int:
    return (a + b - 1) // b * b


def _predict_layer_kernel(x_ref, w1_ref, b1_ref, w2_ref, b2_ref, o_ref, h_ref):
    # Vocab (axis 1) is the innermost grid axis: compute the hidden activation
    # once per token tile and cache it (bf16) in VMEM for all vocab tiles.
    @pl.when(pl.program_id(1) == 0)
    def _():
        h = jnp.dot(x_ref[...], w1_ref[...],
                    preferred_element_type=jnp.float32)        # (TM, H) f32 acc
        h_ref[...] = jnp.maximum(h + b1_ref[...], 0.0).astype(h_ref.dtype)

    # Dominant GEMM: (TM, H) x (H, TN) on the MXU, f32 accumulation.
    out = jnp.dot(h_ref[...], w2_ref[...], preferred_element_type=jnp.float32)
    o_ref[...] = (out + b2_ref[...]).astype(o_ref.dtype)


@functools.partial(jax.jit, static_argnames=("tm", "tn"))
def predict_layer(x, w1, b1, w2, b2, *, tm=256, tn=1024):
    """x: (..., H). Returns (..., V) = ReLU(x @ w1 + b1) @ w2 + b2."""
    hidden = x.shape[-1]
    voc = w2.shape[-1]
    lead = x.shape[:-1]
    tokens = 1
    for d in lead:
        tokens *= d

    out_dtype = x.dtype  # TODO(synk): emit bf16 logits if downstream loss accepts it.

    # --- dtype plumbing: bf16 operands into the MXU, f32 biases / accumulation.
    x2d = x.reshape(tokens, hidden).astype(jnp.bfloat16)
    w1b = w1.astype(jnp.bfloat16)
    w2b = w2.astype(jnp.bfloat16)
    b1f = b1.reshape(1, hidden).astype(jnp.float32)
    b2f = b2.reshape(1, voc).astype(jnp.float32)

    # --- tile sizes: lane/sublane + MXU friendly, shrunk for tiny problems.
    tm = min(tm, _round_up(tokens, 8))
    tn = min(tn, _round_up(voc, 128))

    # --- pad tokens to a multiple of TM and vocab to a multiple of TN (>=128),
    # keeping the output tile lane-dense (no masked partial stores).
    t_pad = _round_up(tokens, tm)
    v_pad = _round_up(voc, tn)
    if t_pad != tokens:
        x2d = jnp.pad(x2d, ((0, t_pad - tokens), (0, 0)))
    if v_pad != voc:
        w2b = jnp.pad(w2b, ((0, 0), (0, v_pad - voc)))
        b2f = jnp.pad(b2f, ((0, 0), (0, v_pad - voc)))

    grid = (t_pad // tm, v_pad // tn)

    # --- VMEM budget (double-buffered tiles + resident W1 + bf16 h scratch),
    # clamped so it fits every generation (v7x has 64 MiB physical per TC).
    vmem_est = (
        2 * tm * hidden * 2          # x tiles (bf16, double-buffered)
        + 2 * hidden * hidden * 2    # W1 (bf16, conservatively doubled)
        + 2 * hidden * tn * 2        # W2 tiles (bf16, double-buffered)
        + 2 * tm * tn * 4            # output tiles (double-buffered)
        + tm * hidden * 2            # h scratch (bf16)
        + 4 * (hidden + tn) * 4      # biases + slack
    )
    vmem_limit = min(2 * vmem_est + (4 << 20), 48 << 20)

    cost = pl.CostEstimate(
        flops=2 * t_pad * hidden * hidden + 2 * t_pad * hidden * v_pad,
        transcendentals=0,
        bytes_accessed=(x2d.size * 2 + w1b.size * 2 + w2b.size * 2
                        + b1f.size * 4 + b2f.size * 4
                        + t_pad * v_pad * jnp.dtype(out_dtype).itemsize),
    )

    out2d = pl.pallas_call(
        _predict_layer_kernel,
        out_shape=jax.ShapeDtypeStruct((t_pad, v_pad), out_dtype),
        grid_spec=pltpu.PrefetchScalarGridSpec(
            num_scalar_prefetch=0,
            grid=grid,
            in_specs=[
                pl.BlockSpec((tm, hidden), lambda i, j: (i, 0)),      # x tile
                pl.BlockSpec((hidden, hidden), lambda i, j: (0, 0)),  # W1 (resident)
                pl.BlockSpec((1, hidden), lambda i, j: (0, 0)),       # b1
                pl.BlockSpec((hidden, tn), lambda i, j: (0, j)),      # W2 tile
                pl.BlockSpec((1, tn), lambda i, j: (0, j)),           # b2 tile
            ],
            out_specs=pl.BlockSpec((tm, tn), lambda i, j: (i, j)),
            scratch_shapes=[pltpu.VMEM((tm, hidden), jnp.bfloat16)],  # cached h
        ),
        compiler_params=pltpu.CompilerParams(
            dimension_semantics=("parallel", "arbitrary"),
            vmem_limit_bytes=vmem_limit,
        ),
        cost_estimate=cost,
    )(x2d, w1b, b1f, w2b, b2f)

    return out2d[:tokens, :voc].reshape(*lead, voc)


if __name__ == "__main__":
    # Small shapes consistent with the module: batch=2, seq=8, hidden=32, voc=64.
    B, S, H, V = 2, 8, 32, 64

    key = jax.random.PRNGKey(0)
    kx, kw1, kb1, kw2, kb2 = jax.random.split(key, 5)

    x = jax.random.normal(kx, (B, S, H), dtype=jnp.float32)
    # Deterministic parameter init (weights stored as [in, out]).
    w1 = jax.random.normal(kw1, (H, H), dtype=jnp.float32) * 0.02
    b1 = jax.random.normal(kb1, (H,), dtype=jnp.float32) * 0.02
    w2 = jax.random.normal(kw2, (H, V), dtype=jnp.float32) * 0.02
    b2 = jax.random.normal(kb2, (V,), dtype=jnp.float32) * 0.02

    out = predict_layer(x, w1, b1, w2, b2)
    jax.block_until_ready(out)
    assert out.shape == (B, S, V)
    assert out.dtype == x.dtype

    # Reference 1: same bf16-in / f32-accumulate math as the kernel.
    x2d = x.reshape(-1, H).astype(jnp.bfloat16)
    h_f32 = jnp.maximum(
        jnp.dot(x2d, w1.astype(jnp.bfloat16),
                preferred_element_type=jnp.float32) + b1.reshape(1, H), 0.0)
    ref_bf16 = (jnp.dot(h_f32.astype(jnp.bfloat16), w2.astype(jnp.bfloat16),
                        preferred_element_type=jnp.float32)
                + b2.reshape(1, V)).reshape(B, S, V)
    assert jnp.allclose(out, ref_bf16, atol=1e-3, rtol=1e-3)

    # Reference 2: pure-f32 PyTorch semantics (sanity check on bf16 cast error).
    ref_f32 = (jnp.maximum(x.reshape(-1, H) @ w1 + b1, 0.0) @ w2 + b2).reshape(B, S, V)
    assert jnp.allclose(out, ref_f32, atol=5e-2, rtol=5e-2)

    print("KERNEL_OK")
</pallas_src>

<mosaic_0001>
module attributes {stable_mosaic.version = 11 : i64} {
  func.func @_predict_layer_kernel(%arg0: i32, %arg1: i32, %arg2: memref<16x32xbf16, #tpu.memory_space<vmem>>, %arg3: memref<32x32xbf16, #tpu.memory_space<vmem>>, %arg4: memref<1x32xf32, #tpu.memory_space<vmem>>, %arg5: memref<32x128xbf16, #tpu.memory_space<vmem>>, %arg6: memref<1x128xf32, #tpu.memory_space<vmem>>, %arg7: memref<16x128xf32, #tpu.memory_space<vmem>>, %arg8: memref<16x32xbf16, #tpu.memory_space<vmem>>) attributes {dimension_semantics = [#tpu.dimension_semantics<parallel>, #tpu.dimension_semantics<arbitrary>], iteration_bounds = array<i64: 1, 1>, scalar_prefetch = 0 : i64, scratch_operands = 1 : i64, tpu.core_type = #tpu.core_type<tc>, window_params = [{transform_indices = @transform_0, window_bounds = array<i64: 16, 32>}, {pipeline_mode = #tpu.pipeline_mode<synchronous>, transform_indices = @transform_1, window_bounds = array<i64: 32, 32>}, {pipeline_mode = #tpu.pipeline_mode<synchronous>, transform_indices = @transform_2, window_bounds = array<i64: 1, 32>}, {transform_indices = @transform_3, window_bounds = array<i64: 32, 128>}, {transform_indices = @transform_4, window_bounds = array<i64: 1, 128>}, {transform_indices = @transform_5, window_bounds = array<i64: 16, 128>}]} {
    %c0_i32 = arith.constant 0 : i32
    %0 = arith.cmpi eq, %arg1, %c0_i32 : i32
    %1 = arith.extui %0 : i1 to i32
    %c0_i32_0 = arith.constant 0 : i32
    %2 = arith.cmpi ne, %1, %c0_i32_0 : i32
    scf.if %2 {
      %c0_8 = arith.constant 0 : index
      %c0_9 = arith.constant 0 : index
      %10 = vector.load %arg2[%c0_8, %c0_9] : memref<16x32xbf16, #tpu.memory_space<vmem>>, vector<16x32xbf16>
      %c0_10 = arith.constant 0 : index
      %c0_11 = arith.constant 0 : index
      %11 = vector.load %arg3[%c0_10, %c0_11] : memref<32x32xbf16, #tpu.memory_space<vmem>>, vector<32x32xbf16>
      %cst_12 = arith.constant dense<0.000000e+00> : vector<16x32xf32>
      %12 = tpu.matmul %10, %11, %cst_12 {dimension_numbers = #tpu.dot_dimension_numbers<[1], [0], [0], [1], [0, 0, 1, 1], [], []>} : vector<16x32xbf16>, vector<32x32xbf16>, vector<16x32xf32> -> vector<16x32xf32>
      %c0_13 = arith.constant 0 : index
      %c0_14 = arith.constant 0 : index
      %13 = vector.load %arg4[%c0_13, %c0_14] : memref<1x32xf32, #tpu.memory_space<vmem>>, vector<1x32xf32>
      %14 = vector.broadcast %13 : vector<1x32xf32> to vector<16x32xf32>
      %15 = arith.addf %12, %14 : vector<16x32xf32>
      %cst_15 = arith.constant 0.000000e+00 : f32
      %16 = vector.broadcast %cst_15 : f32 to vector<16x32xf32>
      %17 = arith.maximumf %15, %16 : vector<16x32xf32>
      %18 = arith.truncf %17 : vector<16x32xf32> to vector<16x32xbf16>
      %c0_16 = arith.constant 0 : index
      %c0_17 = arith.constant 0 : index
      %19 = vector.load %arg8[%c0_16, %c0_17] : memref<16x32xbf16, #tpu.memory_space<vmem>>, vector<16x32xbf16>
      tpu.vector_store %arg8[%c0_16, %c0_17], %18 {strides = array<i32>} : memref<16x32xbf16, #tpu.memory_space<vmem>>, vector<16x32xbf16>,
    } else {
    }
    %c0 = arith.constant 0 : index
    %c0_1 = arith.constant 0 : index
    %3 = vector.load %arg8[%c0, %c0_1] : memref<16x32xbf16, #tpu.memory_space<vmem>>, vector<16x32xbf16>
    %c0_2 = arith.constant 0 : index
    %c0_3 = arith.constant 0 : index
    %4 = vector.load %arg5[%c0_2, %c0_3] : memref<32x128xbf16, #tpu.memory_space<vmem>>, vector<32x128xbf16>
    %cst = arith.constant dense<0.000000e+00> : vector<16x128xf32>
    %5 = tpu.matmul %3, %4, %cst {dimension_numbers = #tpu.dot_dimension_numbers<[1], [0], [0], [1], [0, 0, 1, 1], [], []>} : vector<16x32xbf16>, vector<32x128xbf16>, vector<16x128xf32> -> vector<16x128xf32>
    %c0_4 = arith.constant 0 : index
    %c0_5 = arith.constant 0 : index
    %6 = vector.load %arg6[%c0_4, %c0_5] : memref<1x128xf32, #tpu.memory_space<vmem>>, vector<1x128xf32>
    %7 = vector.broadcast %6 : vector<1x128xf32> to vector<16x128xf32>
    %8 = arith.addf %5, %7 : vector<16x128xf32>
    %c0_6 = arith.constant 0 : index
    %c0_7 = arith.constant 0 : index
    %9 = vector.load %arg7[%c0_6, %c0_7] : memref<16x128xf32, #tpu.memory_space<vmem>>, vector<16x128xf32>
    tpu.vector_store %arg7[%c0_6, %c0_7], %8 {strides = array<i32>} : memref<16x128xf32, #tpu.memory_space<vmem>>, vector<16x128xf32>,
    return
  }
  func.func @transform_0(%arg0: i32, %arg1: i32) -> (i32, i32) {
    %c0_i32 = arith.constant 0 : i32
    %c0_i32_0 = arith.constant 0 : i32
    return %arg0, %c0_i32 : i32, i32
  }
  func.func @transform_1(%arg0: i32, %arg1: i32) -> (i32, i32) {
    %c0_i32 = arith.constant 0 : i32
    %c0_i32_0 = arith.constant 0 : i32
    %c0_i32_1 = arith.constant 0 : i32
    return %c0_i32, %c0_i32_0 : i32, i32
  }
  func.func @transform_2(%arg0: i32, %arg1: i32) -> (i32, i32) {
    %c0_i32 = arith.constant 0 : i32
    %c0_i32_0 = arith.constant 0 : i32
    %c0_i32_1 = arith.constant 0 : i32
    return %c0_i32, %c0_i32_0 : i32, i32
  }
  func.func @transform_3(%arg0: i32, %arg1: i32) -> (i32, i32) {
    %c0_i32 = arith.constant 0 : i32
    %c0_i32_0 = arith.constant 0 : i32
    return %c0_i32, %arg1 : i32, i32
  }
  func.func @transform_4(%arg0: i32, %arg1: i32) -> (i32, i32) {
    %c0_i32 = arith.constant 0 : i32
    %c0_i32_0 = arith.constant 0 : i32
    return %c0_i32, %arg1 : i32, i32
  }
  func.func @transform_5(%arg0: i32, %arg1: i32) -> (i32, i32) {
    %c0_i32 = arith.constant 0 : i32
    return %arg0, %arg1 : i32, i32
  }
}

</mosaic_0001>

<llo_original>
// kernel: predict_layer.1
$region0: #{predict_layer.1}
  #allocation0 [shape = 'u32[]', space=smem, size = 0x4, offset = 0x4, fixed_abs, tag = 'smem constant byte address 0x4 - core index']
  #allocation1 [shape = 'u32[144,128]{1,0:T(1,128)}', space=vmem, size = 0x12000, scoped, tag = 'internal scratch']
  #allocation2 [shape = 'bf16[16,32]{1,0:T(8,128)(2,1)}', space=vmem, size = 0x1000, scoped, tag = 'scratch operand']
  %s0 = inlined_call_operand.vmem [shape: bf16[16,32], index: 0, kind: input, shape index: {}]
  %s1 = inlined_call_operand.vmem [shape: bf16[32,32], index: 1, kind: input, shape index: {}]
  %s2 = inlined_call_operand.vmem [shape: f32[1,32], index: 2, kind: input, shape index: {}]
  %s3 = inlined_call_operand.vmem [shape: bf16[32,128], index: 3, kind: input, shape index: {}]
  %s4 = inlined_call_operand.vmem [shape: f32[1,128], index: 4, kind: input, shape index: {}]
  %s5 = inlined_call_operand.vmem [shape: f32[16,128], index: 5, kind: output, shape index: {}]
  %s6 = sld [smem:[#allocation0]]
  $region34: #{predict_layer.1} parent=0
    _
  %s8 = ssub.s32 1, %s6
  %s9 = scalar_select 0, %s8, %s6
  // Predicated region
  $region2: #{predict_layer.1} parent=0 // pred_check
    _
  $region3: #{predict_layer.1} parent=0 // pred_check_branch
    %11 = sbr.rel (0) target = $region5
  $region4: #{predict_layer.1} parent=0 // pred_region
    _
  $region5: #{predict_layer.1} parent=0 // pred_fallthru
    _
  // Predicated region
  $region6: #{predict_layer.1} parent=0 // pred_check
    _
  $region7: #{predict_layer.1} parent=0 // pred_check_branch
    %13 = sbr.rel (0) target = $region9
  $region8: #{predict_layer.1} parent=0 // pred_region
    _
  $region9: #{predict_layer.1} parent=0 // pred_fallthru
    _
  // Predicated region
  $region10: #{predict_layer.1} parent=0 // pred_check
    _
  $region11: #{predict_layer.1} parent=0 // pred_check_branch
    %15 = sbr.rel (0) target = $region13
  $region12: #{predict_layer.1} parent=0 // pred_region
    _
  $region13: #{predict_layer.1} parent=0 // pred_fallthru
    _
  // Predicated region
  $region14: #{predict_layer.1} parent=0 // pred_check
    _
  $region15: #{predict_layer.1} parent=0 // pred_check_branch
    %17 = sbr.rel (0) target = $region17
  $region16: #{predict_layer.1} parent=0 // pred_region
    _
  $region17: #{predict_layer.1} parent=0 // pred_fallthru
    _
  // Predicated region
  $region18: #{predict_layer.1} parent=0 // pred_check
    _
  $region19: #{predict_layer.1} parent=0 // pred_check_branch
    %19 = sbr.rel (0) target = $region21
  $region20: #{predict_layer.1} parent=0 // pred_region
    _
  $region21: #{predict_layer.1} parent=0 // pred_fallthru
    _
  %p21 = scmp.eq.s32.totalorder 0, 0
  // Predicated region
  $region22: #{predict_layer.1} parent=0 // pred_check
    %p22 = pneg %p21
  $region23: #{predict_layer.1} parent=0 // pred_check_branch
    %24 = sbr.rel (%p22) target = $region25
  $region24: #{predict_layer.1} parent=0 // pred_region
    %v25 = vld [vmem:[%s0] sm:$0xf]
    %v26 = vld [vmem:[%s0 + $0x4] sm:$0xf]
    %v27 = vld [vmem:[%s1] sm:$0xf]
    %v28 = vld [vmem:[%s1 + $0x4] sm:$0xf]
    %v29 = vld [vmem:[%s1 + $0x8] sm:$0xf]
    %v30 = vld [vmem:[%s1 + $0xc] sm:$0xf]
    %v31 = vld [vmem:[%s2] sm:$0x1]
    %v33 = vlaneseq
    %v34 = vshrl.u32 %v33, 7
    %v35 = vsub.s32 0, %v34
    %v36 = vrot.slane %v31, %v35
    %v40 = vunpack.c.l.b16 %v25
    %v41 = vunpack.c.l.b16 %v26
    %v42 = vpack.c.b16 %v41, %v40
    %v47 = vunpack.c.l.b16 %v27
    %v48 = vunpack.c.l.b16 %v28
    %v49 = vunpack.c.l.b16 %v29
    %v50 = vunpack.c.l.b16 %v30
    %v51 = vpack.c.b16 %v48, %v47
    %v52 = vpack.c.b16 %v50, %v49
    %vm55 = vcmask 261120
    %v57 = vsel %vm55, %v42, 0
    %59 = vmatprep.subr.bf16.mxu0 0
    %60 = vmatpush1.bf16.msra.mxu0 0
    %61 = vmatprep.subr.bf16.mxu0 0
    %62 = vmatpush1.bf16.msra.mxu0 0
    %63 = vmatprep.subr.bf16.mxu0 0
    %64 = vmatpush1.bf16.msra.mxu0 0
    %65 = vmatprep.subr.bf16.mxu0 0
    %66 = vmatpush1.bf16.msra.mxu0 0
    %67 = vmatprep.subr.bf16.mxu0 0
    %68 = vmatpush1.bf16.msra.mxu0 0
    %69 = vmatprep.subr.bf16.mxu0 0
    %70 = vmatpush1.bf16.msra.mxu0 0
    %71 = vmatprep.subr.bf16.mxu0 0
    %72 = vmatpush1.bf16.msra.mxu0 %v52
    %73 = vmatprep.subr.bf16.mxu0 0
    %74 = vmatpush1.bf16.msra.mxu0 %v51
    %75 = vmatprep.subr.bf16.mxu0 0
    %76 = vmatpush2.bf16.msra.mxu0 0
    %77 = vmatprep.subr.bf16.mxu0 0
    %78 = vmatpush2.bf16.msra.mxu0 0
    %79 = vmatprep.subr.bf16.mxu0 0
    %80 = vmatpush2.bf16.msra.mxu0 0
    %81 = vmatprep.subr.bf16.mxu0 0
    %82 = vmatpush2.bf16.msra.mxu0 0
    %83 = vmatprep.subr.bf16.mxu0 0
    %84 = vmatpush2.bf16.msra.mxu0 0
    %85 = vmatprep.subr.bf16.mxu0 0
    %86 = vmatpush2.bf16.msra.mxu0 0
    %87 = vmatprep.subr.bf16.mxu0 0
    %88 = vmatpush2.bf16.msra.mxu0 0
    %89 = vmatprep.subr.bf16.mxu0 0
    %90 = vmatpush2.bf16.msra.mxu0 0
    %91 = vmatprep.mubr.bf16.mxu0 0
    %92 = vmatmul.mubr.bf16.gmra.mxu0 %v57
    %v93 = vpop.f32.mrf.mxu0
    %v94 = vadd.f32 %v36, %v93
    %v95 = vpop.f32.mrf.mxu0
    %v96 = vpop.f32.mrf.mxu0
    %v97 = vadd.f32 %v36, %v96
    %v98 = vpop.f32.mrf.mxu0
    %99 = vdwg.mxu0
    %v100 = vmax.f32 %v94, 0.0
    %v101 = vmax.f32 %v97, 0.0
    %v102 = vpack.c.bf16 %v101, %v100
    %v104 = vunpack.c.l.b16 %v102
    %v105 = vunpack.c.h.b16 %v102
    %v106 = vpack.c.b16 %v104, %v104
    %v107 = vpack.c.b16 %v105, %v105
    %vm110 = vcmask 257024
    %111 = vst.msk [vmem:[#allocation2] sm:$0xf] %vm110, %v106
    %112 = vst.msk [vmem:[#allocation2 + $0x4] sm:$0xf] %vm110, %v107
  $region25: #{predict_layer.1} parent=0 // pred_fallthru
    _
  %v113 = vld [vmem:[#allocation2] sm:$0xf]
  %v114 = vld [vmem:[#allocation2 + $0x4] sm:$0xf]
  %v115 = vld [vmem:[%s3] sm:$0xf]
  %v116 = vld [vmem:[%s3 + $0x4] sm:$0xf]
  %v117 = vld [vmem:[%s3 + $0x8] sm:$0xf]
  %v118 = vld [vmem:[%s3 + $0xc] sm:$0xf]
  %v119 = vld [vmem:[%s4] sm:$0x1]
  %v121 = vlaneseq
  %v122 = vshrl.u32 %v121, 7
  %v123 = vsub.s32 0, %v122
  %v124 = vrot.slane %v119, %v123
  %v128 = vunpack.c.l.b16 %v113
  %v129 = vunpack.c.l.b16 %v114
  %v130 = vpack.c.b16 %v129, %v128
  %v135 = vunpack.c.l.b16 %v115
  %v136 = vunpack.c.l.b16 %v116
  %v137 = vunpack.c.l.b16 %v117
  %v138 = vunpack.c.l.b16 %v118
  %v139 = vpack.c.b16 %v136, %v135
  %v140 = vpack.c.b16 %v138, %v137
  %vm143 = vcmask 261120
  %v145 = vsel %vm143, %v130, 0
  %147 = vmatprep.subr.bf16.mxu0 0
  %148 = vmatpush1.bf16.msra.mxu0 0
  %149 = vmatprep.subr.bf16.mxu0 0
  %150 = vmatpush1.bf16.msra.mxu0 0
  %151 = vmatprep.subr.bf16.mxu0 0
  %152 = vmatpush1.bf16.msra.mxu0 0
  %153 = vmatprep.subr.bf16.mxu0 0
  %154 = vmatpush1.bf16.msra.mxu0 0
  %155 = vmatprep.subr.bf16.mxu0 0
  %156 = vmatpush1.bf16.msra.mxu0 0
  %157 = vmatprep.subr.bf16.mxu0 0
  %158 = vmatpush1.bf16.msra.mxu0 0
  %159 = vmatprep.subr.bf16.mxu0 0
  %160 = vmatpush1.bf16.msra.mxu0 %v140
  %161 = vmatprep.subr.bf16.mxu0 0
  %162 = vmatpush1.bf16.msra.mxu0 %v139
  %163 = vmatprep.subr.bf16.mxu0 0
  %164 = vmatpush2.bf16.msra.mxu0 0
  %165 = vmatprep.subr.bf16.mxu0 0
  %166 = vmatpush2.bf16.msra.mxu0 0
  %167 = vmatprep.subr.bf16.mxu0 0
  %168 = vmatpush2.bf16.msra.mxu0 0
  %169 = vmatprep.subr.bf16.mxu0 0
  %170 = vmatpush2.bf16.msra.mxu0 0
  %171 = vmatprep.subr.bf16.mxu0 0
  %172 = vmatpush2.bf16.msra.mxu0 0
  %173 = vmatprep.subr.bf16.mxu0 0
  %174 = vmatpush2.bf16.msra.mxu0 0
  %175 = vmatprep.subr.bf16.mxu0 0
  %176 = vmatpush2.bf16.msra.mxu0 0
  %177 = vmatprep.subr.bf16.mxu0 0
  %178 = vmatpush2.bf16.msra.mxu0 0
  %179 = vmatprep.mubr.bf16.mxu0 0
  %180 = vmatmul.mubr.bf16.gmra.mxu0 %v145
  %v181 = vpop.f32.mrf.mxu0
  %v182 = vadd.f32 %v124, %v181
  %v183 = vpop.f32.mrf.mxu0
  %v184 = vpop.f32.mrf.mxu0
  %v185 = vadd.f32 %v124, %v184
  %v186 = vpop.f32.mrf.mxu0
  %187 = vdwg.mxu0
  %188 = vst [vmem:[%s5] sm:$0xff] %v182
  %189 = vst [vmem:[%s5 + $0x8] sm:$0xff] %v185
  // Predicated region
  $region26: #{predict_layer.1} parent=0 // pred_check
    _
  $region27: #{predict_layer.1} parent=0 // pred_check_branch
    %191 = sbr.rel (0) target = $region29
  $region28: #{predict_layer.1} parent=0 // pred_region
    _
  $region29: #{predict_layer.1} parent=0 // pred_fallthru
    _
  // Predicated region
  $region30: #{predict_layer.1} parent=0 // pred_check
    _
  $region31: #{predict_layer.1} parent=0 // pred_check_branch
    %193 = sbr.rel (0) target = $region33
  $region32: #{predict_layer.1} parent=0 // pred_region
    _
  $region33: #{predict_layer.1} parent=0 // pred_fallthru
    _

</llo_original>
